<compile_context>
chip_gen: v5e
topology: v5e:2x2
jax: 0.10.0
libtpu: 0.0.40
codegen_flags: <defaults>
</compile_context>

<pallas_src>
import math
import functools

import jax
import jax.numpy as jnp
from jax.experimental import pallas as pl
from jax.experimental.pallas import tpu as pltpu


def make_positional_encoding(max_seq_len: int, d_model: int):
    """Deterministic buffer setup, identical to the torch __init__ (kept in f32)."""
    position = jnp.arange(max_seq_len, dtype=jnp.float32)[:, None]          # [L, 1]
    div_term = jnp.exp(
        jnp.arange(0, d_model, 2, dtype=jnp.float32) * (-math.log(10000.0) / d_model)
    )                                                                        # [D/2]
    pe = jnp.zeros((max_seq_len, d_model), dtype=jnp.float32)
    pe = pe.at[:, 0::2].set(jnp.sin(position * div_term))
    pe = pe.at[:, 1::2].set(jnp.cos(position * div_term))
    return pe


def prepare_pe_view(pe_full, seq_len: int, d_model: int):
    """Hoisted once-per-shape pe prep: slice to [S, D] and, when S*D is a multiple of
    128, reshape to the lane-dense [R, 128] view the kernel consumes.  Returns
    (pe_view, lane_dense, R, L)."""
    pe = pe_full[:seq_len, :].astype(jnp.float32)
    flat = seq_len * d_model
    if flat % 128 == 0:
        R = flat // 128
        return pe.reshape(R, 128), True, R, 128
    # TODO(synk): pad D up to a lane multiple for full lane density; fall back to the
    # [S, D] layout (masked partial stores when D < 128).
    return pe, False, seq_len, d_model


# ---------------------------------------------------------------------------
# Kernels
# ---------------------------------------------------------------------------
def _pe_add_kernel(x_ref, pe_ref, o_ref):
    # x_ref: (TB, TR, L) tile; pe_ref: (TR, L) matching rows (resident across batch).
    y = x_ref[...].astype(jnp.float32) + pe_ref[...][None, :, :]
    o_ref[...] = y.astype(o_ref.dtype)


def _pe_add_dropout_kernel(x_ref, pe_ref, bits_ref, o_ref, *, rate: float):
    y = x_ref[...].astype(jnp.float32) + pe_ref[...][None, :, :]
    # Keep-probability is (2^32 - floor(rate*2^32))/2^32: biased by at most 2^-32 vs
    # torch's bernoulli; clamp so rate -> 1.0 cannot wrap the uint32 threshold.
    threshold = jnp.uint32(min(int(rate * 4294967296.0), 4294967295))
    inv_keep = jnp.float32(1.0 / (1.0 - rate))
    keep = (bits_ref[...] >= threshold).astype(jnp.float32)
    # Fold the 1/(1-p) scale into the mask: one multiply, no where/zeros tile.
    o_ref[...] = (y * (keep * inv_keep)).astype(o_ref.dtype)


# ---------------------------------------------------------------------------
# Wrapper
# ---------------------------------------------------------------------------
def positional_encoder_forward(x, pe_full, *, dropout_rate: float = 0.1,
                               train: bool = False, rng_key=None,
                               target_block_bytes: int = 2 * 1024 * 1024,
                               pe_view=None):
    """x: [B, S, D] (batch_first).  Returns dropout(x + pe[:S]) with torch semantics.

    target_block_bytes ~2 MiB is the measured v5e/v6e roofline plateau; raise to ~4 MiB
    on v7x (still well under its 64 MiB VMEM with the 32 MiB limit below)."""
    B, S, D = x.shape
    rate = float(dropout_rate)
    use_dropout = bool(train) and rate > 0.0

    if use_dropout and rate >= 1.0:
        # nn.Dropout(p=1) zeroes everything; avoid inf scale / wrapped threshold.
        return jnp.zeros_like(x)

    if pe_view is None:
        pek, lane_dense, R, L = prepare_pe_view(pe_full, S, D)
    else:
        pek, lane_dense, R, L = pe_view

    xk = x.reshape(B, R, L) if lane_dense else x

    operands = [xk, pek]
    if use_dropout:
        if rng_key is None:
            rng_key = jax.random.PRNGKey(0)
        # Per-call random bits from a caller-supplied key: no stream reuse across
        # steps/tiles as long as the caller folds the step index into the key.
        bits = jax.random.bits(rng_key, xk.shape, dtype=jnp.uint32)
        operands.append(bits)

    # ---- tile sizing from actual stream widths (x/out + f32 pe + optional u32 bits) --
    x_itemsize = jnp.dtype(x.dtype).itemsize
    max_itemsize = max(x_itemsize, 4)                      # pe is f32; bits are u32
    max_rows = max(8, target_block_bytes // (L * max_itemsize))

    if not lane_dense:
        # Fallback layout: keep full (S, D) trailing dims so blocks satisfy the
        # (8, 128) rule by being full-extent; only block the batch axis if huge.
        TR = R
        TB = B if B * R <= max_rows else 1
    elif B * R <= max_rows:
        TB, TR = B, R                                      # single-block fast path
    elif R <= max_rows:
        TB, TR = 1, R
    else:
        TB, TR = 1, max(8, (max_rows // 8) * 8)            # sublane-aligned row tile
    nR = pl.cdiv(R, TR)
    nB = pl.cdiv(B, TB)

    def x_index(r, b):                                     # batch innermost => pe block
        return (b, r, 0)                                   # index constant per inner run

    x_spec = pl.BlockSpec((TB, TR, L), x_index)
    pe_spec = pl.BlockSpec((TR, L), lambda r, b: (r, 0))
    in_specs = [x_spec, pe_spec]
    if use_dropout:
        in_specs.append(pl.BlockSpec((TB, TR, L), x_index))
        kernel = functools.partial(_pe_add_dropout_kernel, rate=rate)
    else:
        kernel = _pe_add_kernel

    out = pl.pallas_call(
        kernel,
        out_shape=jax.ShapeDtypeStruct(xk.shape, x.dtype),
        grid_spec=pltpu.PrefetchScalarGridSpec(
            num_scalar_prefetch=0,
            grid=(nR, nB),                                 # row tiles outer, batch inner
            in_specs=in_specs,
            out_specs=pl.BlockSpec((TB, TR, L), x_index),
        ),
        compiler_params=pltpu.CompilerParams(
            # Outer row-tile axis sharded across TCs (v7x); inner batch axis kept
            # sequential so each core preserves its own pe-tile residency run.
            dimension_semantics=("parallel", "arbitrary"),
            # Double-buffered x/out/bits + pe tiles stay far below 32 MiB, which fits
            # every generation including v7x's 64 MiB physical VMEM.
            vmem_limit_bytes=32 * 1024 * 1024,
        ),
    )(*operands)

    return out.reshape(B, S, D) if lane_dense else out


if __name__ == "__main__":
    # Small shapes consistent with the module's forward: [batch, seq, latent_dim].
    B, S, D = 2, 8, 32
    MAX_SEQ_LEN = 64

    key = jax.random.PRNGKey(0)
    x = jax.random.normal(key, (B, S, D), dtype=jnp.float32)
    pe_full = make_positional_encoding(MAX_SEQ_LEN, D)
    pe_view = prepare_pe_view(pe_full, S, D)               # hoisted once per shape

    # Eval-mode forward (dropout is identity), matching module.eval() semantics.
    out = jax.block_until_ready(
        positional_encoder_forward(x, pe_full, dropout_rate=0.1, train=False,
                                   pe_view=pe_view))
    ref = x + pe_full[:S, :][None, :, :]
    assert out.shape == (B, S, D)
    assert jnp.allclose(out, ref, atol=1e-6), "eval mismatch vs reference"

    # Lane-dense multi-row-tile path: D = 128, tiny target_block_bytes to force nR > 1.
    B2, S2, D2 = 2, 64, 128
    x2 = jax.random.normal(jax.random.PRNGKey(1), (B2, S2, D2), dtype=jnp.float32)
    pe2 = make_positional_encoding(MAX_SEQ_LEN, D2)
    out2 = jax.block_until_ready(
        positional_encoder_forward(x2, pe2, dropout_rate=0.1, train=False,
                                   target_block_bytes=8192))
    ref2 = x2 + pe2[:S2, :][None, :, :]
    assert jnp.allclose(out2, ref2, atol=1e-6), "eval mismatch (tiled D=128) vs reference"

    # Fallback (non-lane-dense) path: S*D not a multiple of 128.
    B3, S3, D3 = 2, 5, 24
    x3 = jax.random.normal(jax.random.PRNGKey(2), (B3, S3, D3), dtype=jnp.float32)
    pe3 = make_positional_encoding(MAX_SEQ_LEN, D3)
    out3 = jax.block_until_ready(
        positional_encoder_forward(x3, pe3, dropout_rate=0.1, train=False))
    ref3 = x3 + pe3[:S3, :][None, :, :]
    assert jnp.allclose(out3, ref3, atol=1e-6), "eval mismatch (fallback layout) vs reference"

    # Train-mode sanity: every nonzero output equals (x + pe) / (1 - p).
    p = 0.1
    out_tr = jax.block_until_ready(
        positional_encoder_forward(x, pe_full, dropout_rate=p, train=True,
                                   rng_key=jax.random.PRNGKey(123), pe_view=pe_view))
    scaled_ref = ref / (1.0 - p)
    kept = out_tr != 0.0
    ok = jnp.where(kept, jnp.abs(out_tr - scaled_ref) < 1e-4, True)
    assert bool(jnp.all(ok)), "train-mode dropout values inconsistent"

    print("KERNEL_OK")
</pallas_src>

<mosaic_0001>
module attributes {stable_mosaic.version = 11 : i64} {
  func.func @_pe_add_kernel(%arg0: i32, %arg1: i32, %arg2: memref<2x2x128xf32, #tpu.memory_space<vmem>>, %arg3: memref<2x128xf32, #tpu.memory_space<vmem>>, %arg4: memref<2x2x128xf32, #tpu.memory_space<vmem>>) attributes {dimension_semantics = [#tpu.dimension_semantics<parallel>, #tpu.dimension_semantics<arbitrary>], iteration_bounds = array<i64: 1, 1>, scalar_prefetch = 0 : i64, scratch_operands = 0 : i64, tpu.core_type = #tpu.core_type<tc>, window_params = [{transform_indices = @transform_0, window_bounds = array<i64: 2, 2, 128>}, {transform_indices = @transform_1, window_bounds = array<i64: 2, 128>}, {transform_indices = @transform_2, window_bounds = array<i64: 2, 2, 128>}]} {
    %c0 = arith.constant 0 : index
    %c0_0 = arith.constant 0 : index
    %c0_1 = arith.constant 0 : index
    %0 = vector.load %arg2[%c0, %c0_0, %c0_1] : memref<2x2x128xf32, #tpu.memory_space<vmem>>, vector<2x2x128xf32>
    %c0_2 = arith.constant 0 : index
    %c0_3 = arith.constant 0 : index
    %1 = vector.load %arg3[%c0_2, %c0_3] : memref<2x128xf32, #tpu.memory_space<vmem>>, vector<2x128xf32>
    %2 = vector.shape_cast %1 : vector<2x128xf32> to vector<1x2x128xf32>
    %3 = vector.broadcast %2 : vector<1x2x128xf32> to vector<2x2x128xf32>
    %4 = arith.addf %0, %3 : vector<2x2x128xf32>
    %c0_4 = arith.constant 0 : index
    %c0_5 = arith.constant 0 : index
    %c0_6 = arith.constant 0 : index
    %5 = vector.load %arg4[%c0_4, %c0_5, %c0_6] : memref<2x2x128xf32, #tpu.memory_space<vmem>>, vector<2x2x128xf32>
    tpu.vector_store %arg4[%c0_4, %c0_5, %c0_6], %4 {strides = array<i32>} : memref<2x2x128xf32, #tpu.memory_space<vmem>>, vector<2x2x128xf32>,
    return
  }
  func.func @transform_0(%arg0: i32, %arg1: i32) -> (i32, i32, i32) {
    %c0_i32 = arith.constant 0 : i32
    %c0_i32_0 = arith.constant 0 : i32
    return %arg1, %arg0, %c0_i32 : i32, i32, i32
  }
  func.func @transform_1(%arg0: i32, %arg1: i32) -> (i32, i32) {
    %c0_i32 = arith.constant 0 : i32
    %c0_i32_0 = arith.constant 0 : i32
    return %arg0, %c0_i32 : i32, i32
  }
  func.func @transform_2(%arg0: i32, %arg1: i32) -> (i32, i32, i32) {
    %c0_i32 = arith.constant 0 : i32
    %c0_i32_0 = arith.constant 0 : i32
    return %arg1, %arg0, %c0_i32 : i32, i32, i32
  }
}

</mosaic_0001>

<llo_original>
// kernel: tpu_custom_call.1
$region0: #{tpu_custom_call.1}
  #allocation0 [shape = 'u32[]', space=smem, size = 0x4, offset = 0x4, fixed_abs, tag = 'smem constant byte address 0x4 - core index']
  #allocation1 [shape = 'u32[72,128]{1,0:T(1,128)}', space=vmem, size = 0x9000, scoped, tag = 'internal scratch']
  %s0 = inlined_call_operand.hbm [shape: f32[2,2,128], index: 0, kind: input, shape index: {}]
  %s1 = inlined_call_operand.hbm [shape: f32[2,128], index: 1, kind: input, shape index: {}]
  %s2 = inlined_call_operand.hbm [shape: f32[2,2,128], index: 2, kind: output, shape index: {}]
  %s3 = sld [smem:[#allocation0]]
  $region26: #{tpu_custom_call.1} parent=0
    _
  %s5 = ssub.s32 1, %s3
  %s6 = scalar_select 0, %s5, %s3
  $region1: #{tpu_custom_call.1} parent=0
    #allocation2 [shape = 'u8[2048]{0}', space=vmem, size = 0x800, scoped, tag = 'input window, operand 0, single buffered']
    #allocation3 [shape = 's32[1]{0}', space=sflag, size = 0x4, scoped, tag = 'scoped memory for tpu_custom_call.1']
    #allocation4 [shape = 's32[1]{0}', space=sflag, size = 0x4, scoped, tag = 'scoped memory for tpu_custom_call.1']
    #allocation5 [shape = 'u8[1024]{0}', space=vmem, size = 0x400, scoped, tag = 'input window, operand 1, single buffered']
    #allocation6 [shape = 's32[1]{0}', space=sflag, size = 0x4, scoped, tag = 'scoped memory for tpu_custom_call.1']
    #allocation7 [shape = 'u8[2048]{0}', space=vmem, size = 0x800, scoped, tag = 'output window, operand 0, single buffered']
    %7 = vsyncpa [#allocation3], 0
    %8 = vsyncpa [#allocation6], 0
    %9 = vsyncpa [#allocation4], 0
    // Predicated region
    $region2: #{tpu_custom_call.1} parent=1 // pred_check
      _
    $region3: #{tpu_custom_call.1} parent=1 // pred_check_branch
      %11 = sbr.rel (0) target = $region5
    $region4: #{tpu_custom_call.1} parent=1 // pred_region
      %13 = vsyncadd [#allocation3], 0
      %s14 = sshll.u32 %s0, 4
      %s15 = int_to_ptr.hbm [resolvable:$true] %s14
      %s16 = sshll.u32 [#allocation2], 4
      %s17 = int_to_ptr.vmem [resolvable:$true] %s16
      %22 = dma.hbm_to_vmem [thread:$0]  %s15, 64, %s17, [#allocation3], 32, 32, 2
    $region5: #{tpu_custom_call.1} parent=1 // pred_fallthru
      _
    // Predicated region
    $region6: #{tpu_custom_call.1} parent=1 // pred_check
      _
    $region7: #{tpu_custom_call.1} parent=1 // pred_check_branch
      %24 = sbr.rel (0) target = $region9
    $region8: #{tpu_custom_call.1} parent=1 // pred_region
      %26 = vsyncadd [#allocation6], 0
      %s28 = sshll.u32 %s1, 4
      %s29 = int_to_ptr.hbm [resolvable:$true] %s28
      %s30 = sshll.u32 [#allocation5], 4
      %s31 = int_to_ptr.vmem [resolvable:$true] %s30
      %33 = dma.hbm_to_vmem [thread:$0]  %s29, 32, %s31, [#allocation6]
    $region9: #{tpu_custom_call.1} parent=1 // pred_fallthru
      _
    // Predicated region
    $region10: #{tpu_custom_call.1} parent=1 // pred_check
      _
    $region11: #{tpu_custom_call.1} parent=1 // pred_check_branch
      %35 = sbr.rel (0) target = $region13
    $region12: #{tpu_custom_call.1} parent=1 // pred_region
      %37 = dma.done [#allocation3], 64
    $region13: #{tpu_custom_call.1} parent=1 // pred_fallthru
      _
    // Predicated region
    $region14: #{tpu_custom_call.1} parent=1 // pred_check
      _
    $region15: #{tpu_custom_call.1} parent=1 // pred_check_branch
      %39 = sbr.rel (0) target = $region17
    $region16: #{tpu_custom_call.1} parent=1 // pred_region
      %41 = dma.done [#allocation6], 32
    $region17: #{tpu_custom_call.1} parent=1 // pred_fallthru
      _
    %v42 = vld [vmem:[#allocation2] sm:$0x3]
    %v43 = vld [vmem:[#allocation2 + $0x2] sm:$0x3]
    %v44 = vld [vmem:[#allocation5] sm:$0x3]
    %v45 = vadd.f32 %v42, %v44
    %v46 = vadd.f32 %v43, %v44
    %47 = vst [vmem:[#allocation7] sm:$0x3] %v45
    %48 = vst [vmem:[#allocation7 + $0x2] sm:$0x3] %v46
    // Predicated region
    $region18: #{tpu_custom_call.1} parent=1 // pred_check
      _
    $region19: #{tpu_custom_call.1} parent=1 // pred_check_branch
      %50 = sbr.rel (0) target = $region21
    $region20: #{tpu_custom_call.1} parent=1 // pred_region
      %52 = vsyncadd [#allocation4], 0
      %s53 = sshll.u32 [#allocation7], 4
      %s54 = int_to_ptr.vmem [resolvable:$true] %s53
      %s55 = sshll.u32 %s2, 4
      %s56 = int_to_ptr.hbm [resolvable:$true] %s55
      %61 = dma.vmem_to_hbm [thread:$0]  %s54, 64, %s56, [#allocation4], 32, 32, 2
    $region21: #{tpu_custom_call.1} parent=1 // pred_fallthru
      _
    // Predicated region
    $region22: #{tpu_custom_call.1} parent=1 // pred_check
      _
    $region23: #{tpu_custom_call.1} parent=1 // pred_check_branch
      %63 = sbr.rel (0) target = $region25
    $region24: #{tpu_custom_call.1} parent=1 // pred_region
      %65 = dma.done [#allocation4], 64
    $region25: #{tpu_custom_call.1} parent=1 // pred_fallthru
      _
    %66 = vsyncpa [#allocation3], 1
    %67 = vsyncpa [#allocation6], 1
    %68 = vsyncpa [#allocation4], 1

</llo_original>
